<compile_context>
chip_gen: v5e
topology: v5e:2x2
jax: 0.10.0
libtpu: 0.0.40
codegen_flags: <defaults>
</compile_context>

<pallas_src>
import math

import jax
import jax.numpy as jnp
from jax.experimental import pallas as pl
from jax.experimental.pallas import tpu as pltpu

NEG_SLOPE = 0.2      # PyG GATConv default negative_slope
LANE = 128           # TPU lane width: feature dims padded to multiples of this
BIG_NEG = -1e30      # alpha_src pad value for padded source columns (exp -> 0)


def _round_up(x, m):
    return ((x + m - 1) // m) * m


def _nbytes(shape, dtype):
    return math.prod(shape) * jnp.dtype(dtype).itemsize


def _compiler_params(n_grid_axes, block_bytes):
    # Double-buffered streaming blocks + slack; clamp to <=56 MiB so the request
    # is valid on v7x (64 MiB physical VMEM) as well as v5e/v6e (128 MiB).
    est = 2 * block_bytes + (4 << 20)
    limit = int(min(max(est, 32 << 20), 56 << 20))
    sem = ("parallel",) + ("arbitrary",) * (n_grid_axes - 1)
    return pltpu.CompilerParams(dimension_semantics=sem, vmem_limit_bytes=limit)


# --------------------------------------------------------------------------- #
# Kernels
# --------------------------------------------------------------------------- #
def _proj_kernel(x_ref, w_ref, o_ref):
    # h_e1 = x @ W1 (zero-padded), emitted directly in the aggregation dtype.
    o_ref[...] = jnp.dot(x_ref[...], w_ref[...],
                         preferred_element_type=jnp.float32).astype(o_ref.dtype)


def _edge_weights(adj_i8, a_src_row, a_dst_col, m_col):
    """Un-normalized attention weights for one (dst-tile, src-chunk) block.

    adj_i8:    [T, S] int8 0/1 mask, adj[i, j] = 1 iff edge j -> i
    a_src_row: [1, S] source attention logits       (compute dtype)
    a_dst_col: [T, 1] destination attention logits  (compute dtype)
    m_col:     [T, 1] analytic per-row stabilizer (>= every real row logit),
               precomputed in the wrapper -> no in-kernel row-max reduction.
    Returns [T, S] un-normalized weights in compute dtype (MXU lhs operand);
    the 1/denominator normalization is applied after the aggregation matmul.
    """
    s = a_dst_col + a_src_row                  # [T, S]
    s = jnp.maximum(s, NEG_SLOPE * s)          # leaky_relu (slope < 1)
    e = jnp.exp(s - m_col)                     # <= 1 for every real source col
    return adj_i8.astype(e.dtype) * e          # mask = one multiply


def _encoder_kernel(adj_ref, asrc_ref, adst_ref, m_ref, h_ref, w2_ref, w2t_ref,
                    latent_ref, hd1_ref, agg_acc, den_acc):
    k = pl.program_id(1)

    @pl.when(k == 0)
    def _():
        agg_acc[...] = jnp.zeros_like(agg_acc)
        den_acc[...] = jnp.zeros_like(den_acc)

    p = _edge_weights(adj_ref[...], asrc_ref[...], adst_ref[...], m_ref[...])
    den_acc[...] += jnp.sum(p, axis=-1, keepdims=True).astype(jnp.float32)
    agg_acc[...] += jnp.dot(p, h_ref[...], preferred_element_type=jnp.float32)

    @pl.when(k == pl.num_programs(1) - 1)
    def _():
        # Exact f32 normalization, applied post-matmul on the [T, ha] block only
        # (relu commutes with a positive row scale).  Rows with no in-edges
        # (incl. padded rows) have agg == 0, so the clamp keeps them at 0.
        inv = 1.0 / jnp.maximum(den_acc[...], 1e-30)
        h1 = jnp.maximum(agg_acc[...], 0.0) * inv
        latent = jnp.dot(h1, w2_ref[...], preferred_element_type=jnp.float32)
        latent_ref[...] = latent
        # decoder_gat1 linear with tied weight W2^T (pre-transposed in wrapper).
        # Stored in agg_dtype (bf16 on the fast path) intentionally: it is only
        # re-read as an MXU aggregation operand in pass 3.
        hd1_ref[...] = jnp.dot(latent, w2t_ref[...],
                               preferred_element_type=jnp.float32
                               ).astype(hd1_ref.dtype)


def _decoder_kernel(adj_ref, asrc_ref, adst_ref, m_ref, hd1_ref, w1t_ref,
                    recon_ref, agg_acc, den_acc):
    k = pl.program_id(1)

    @pl.when(k == 0)
    def _():
        agg_acc[...] = jnp.zeros_like(agg_acc)
        den_acc[...] = jnp.zeros_like(den_acc)

    # Tied attention from encoder_gat1, recomputed from the tiny alpha vectors.
    p = _edge_weights(adj_ref[...], asrc_ref[...], adst_ref[...], m_ref[...])
    den_acc[...] += jnp.sum(p, axis=-1, keepdims=True).astype(jnp.float32)
    agg_acc[...] += jnp.dot(p, hd1_ref[...], preferred_element_type=jnp.float32)

    @pl.when(k == pl.num_programs(1) - 1)
    def _():
        inv = 1.0 / jnp.maximum(den_acc[...], 1e-30)
        h3 = jnp.maximum(agg_acc[...], 0.0) * inv
        # decoder_gat2 (attention=False): recon = h3 @ W1^T (pre-transposed).
        recon_ref[...] = jnp.dot(h3, w1t_ref[...],
                                 preferred_element_type=jnp.float32)


# --------------------------------------------------------------------------- #
# Wrapper
# --------------------------------------------------------------------------- #
def gat_block_forward(features, edge_index, w1, att_src, att_dst, w2,
                      *, tile_dst=256, tile_src=512, agg_dtype=jnp.bfloat16):
    """features: [N, F] f32; edge_index: [2, E] int32 (row0=src, row1=dst).

    Returns (latent [N, D], recon [N, F]) matching GATBlock.forward (eval mode).

    tile_dst: destination-row tile (256 fills the 256-wide MXU on v6e/v7x).
    tile_src: source-column chunk streamed per inner ("arbitrary") grid step;
      VMEM use is bounded by (tile_dst, tile_src) + (tile_src, ha) blocks, so it
      is independent of N (fits v7x's 64 MiB).  Keep tile_src a multiple of
      tile_dst (node count is padded to their lcm).
    agg_dtype: dtype of the element-wise softmax math, h_e1 / h_d1 streams and
      the MXU aggregation operands (bf16 = fast path on v6e/v7x; use f32 for an
      exact path and on v5e, which has no bf16 VPU/EUP).
    """
    n, f_in = features.shape
    h_dim = w1.shape[1]
    d_out = w2.shape[1]

    f32 = jnp.float32
    cdt = jnp.dtype(agg_dtype)

    np_ = _round_up(n, math.lcm(tile_dst, tile_src))   # padded node count
    fp = _round_up(f_in, LANE)                         # padded input width
    ha = _round_up(h_dim, LANE)                        # padded hidden width
    dp = _round_up(d_out, LANE)                        # padded latent width

    # ---- wrapper-side (cheap XLA) preparation -------------------------------
    x_p = jnp.zeros((np_, fp), f32).at[:n, :f_in].set(features)

    # int8 0/1 adjacency mask adj[dst, src] = 1, built directly in int8 so the
    # dominant N^2 HBM stream is 1 byte/element (read once per pass 2 / pass 3).
    adj = jnp.zeros((np_, np_), jnp.int8).at[edge_index[1], edge_index[0]].set(1)

    # Zero-padded / pre-transposed weights: lane-dense, no .T inside kernels.
    w1_p = jnp.zeros((fp, ha), f32).at[:f_in, :h_dim].set(w1)
    w2_p = jnp.zeros((ha, dp), f32).at[:h_dim, :d_out].set(w2)
    w2t_p = jnp.zeros((dp, ha), f32).at[:d_out, :h_dim].set(w2.T)
    w1t_p = jnp.zeros((ha, fp), f32).at[:h_dim, :f_in].set(w1.T)

    # Attention logits: tiny O(N*F) matvecs in the wrapper (keeps ha unpadded
    # by alpha columns).  Padded source columns get BIG_NEG so exp -> 0.
    a_src = features @ (w1 @ att_src.reshape(-1))
    a_dst = features @ (w1 @ att_dst.reshape(-1))
    a_src_p = jnp.full((np_,), BIG_NEG, f32).at[:n].set(a_src)
    a_dst_p = jnp.zeros((np_,), f32).at[:n].set(a_dst)

    # Analytic per-row stabilizer (softmax is shift-invariant, leaky_relu is
    # monotone):  m[i] = leaky_relu(max_j a_src[j] + a_dst[i]) >= every real row
    # logit, so exp(s - m) <= 1 and no O(N^2) masked row-max is required.
    max_src = jnp.max(a_src_p)
    m_raw = max_src + a_dst_p
    m_p = jnp.maximum(m_raw, NEG_SLOPE * m_raw)

    asrc_row = a_src_p[None, :].astype(cdt)     # [1, Np]
    adst_col = a_dst_p[:, None].astype(cdt)     # [Np, 1]
    m_col = m_p[:, None].astype(cdt)            # [Np, 1]

    grid_rows = np_ // tile_dst
    grid_cols = np_ // tile_src
    grid2 = (grid_rows, grid_cols)

    # ---- pass 1: h_e1 = x @ W1 (emitted in agg_dtype) -----------------------
    proj_block = (_nbytes((tile_dst, fp), f32) + _nbytes((fp, ha), f32)
                  + _nbytes((tile_dst, ha), cdt))
    h_e1 = pl.pallas_call(
        _proj_kernel,
        out_shape=jax.ShapeDtypeStruct((np_, ha), cdt),
        grid=(grid_rows,),
        in_specs=[pl.BlockSpec((tile_dst, fp), lambda i: (i, 0)),
                  pl.BlockSpec((fp, ha), lambda i: (0, 0))],
        out_specs=pl.BlockSpec((tile_dst, ha), lambda i: (i, 0)),
        compiler_params=_compiler_params(1, proj_block),
        cost_estimate=pl.CostEstimate(
            flops=2 * np_ * fp * ha, transcendentals=0,
            bytes_accessed=_nbytes((np_, fp), f32) + _nbytes((fp, ha), f32)
            + _nbytes((np_, ha), cdt)),
    )(x_p, w1_p)

    # ---- pass 2: encoder aggregation + encoder_gat2 + decoder_gat1 linear ---
    enc_block = (_nbytes((tile_dst, tile_src), jnp.int8)
                 + _nbytes((tile_src, ha), cdt)
                 + _nbytes((1, tile_src), cdt) + 2 * _nbytes((tile_dst, 1), cdt)
                 + _nbytes((ha, dp), f32) + _nbytes((dp, ha), f32)
                 + _nbytes((tile_dst, dp), f32) + _nbytes((tile_dst, ha), cdt)
                 + _nbytes((tile_dst, ha), f32) + _nbytes((tile_dst, LANE), f32))
    latent_p, hd1 = pl.pallas_call(
        _encoder_kernel,
        out_shape=(jax.ShapeDtypeStruct((np_, dp), f32),
                   jax.ShapeDtypeStruct((np_, ha), cdt)),
        grid=grid2,
        in_specs=[pl.BlockSpec((tile_dst, tile_src), lambda i, k: (i, k)),  # adj
                  pl.BlockSpec((1, tile_src), lambda i, k: (0, k)),         # a_src
                  pl.BlockSpec((tile_dst, 1), lambda i, k: (i, 0)),         # a_dst
                  pl.BlockSpec((tile_dst, 1), lambda i, k: (i, 0)),         # m
                  pl.BlockSpec((tile_src, ha), lambda i, k: (k, 0)),        # h_e1
                  pl.BlockSpec((ha, dp), lambda i, k: (0, 0)),              # W2
                  pl.BlockSpec((dp, ha), lambda i, k: (0, 0))],             # W2^T
        out_specs=(pl.BlockSpec((tile_dst, dp), lambda i, k: (i, 0)),       # latent
                   pl.BlockSpec((tile_dst, ha), lambda i, k: (i, 0))),      # h_d1
        scratch_shapes=[pltpu.VMEM((tile_dst, ha), f32),
                        pltpu.VMEM((tile_dst, 1), f32)],
        compiler_params=_compiler_params(2, enc_block),
        cost_estimate=pl.CostEstimate(
            flops=2 * np_ * np_ * ha + 4 * np_ * ha * dp,
            transcendentals=np_ * np_,
            bytes_accessed=_nbytes((np_, np_), jnp.int8)
            + grid_rows * _nbytes((np_, ha), cdt)
            + _nbytes((np_, dp), f32) + _nbytes((np_, ha), cdt)),
    )(adj, asrc_row, adst_col, m_col, h_e1, w2_p, w2t_p)

    # ---- pass 3: decoder aggregation (tied attention) + decoder_gat2 --------
    dec_block = (_nbytes((tile_dst, tile_src), jnp.int8)
                 + _nbytes((tile_src, ha), cdt)
                 + _nbytes((1, tile_src), cdt) + 2 * _nbytes((tile_dst, 1), cdt)
                 + _nbytes((ha, fp), f32) + _nbytes((tile_dst, fp), f32)
                 + _nbytes((tile_dst, ha), f32) + _nbytes((tile_dst, LANE), f32))
    recon_p = pl.pallas_call(
        _decoder_kernel,
        out_shape=jax.ShapeDtypeStruct((np_, fp), f32),
        grid=grid2,
        in_specs=[pl.BlockSpec((tile_dst, tile_src), lambda i, k: (i, k)),  # adj
                  pl.BlockSpec((1, tile_src), lambda i, k: (0, k)),         # a_src
                  pl.BlockSpec((tile_dst, 1), lambda i, k: (i, 0)),         # a_dst
                  pl.BlockSpec((tile_dst, 1), lambda i, k: (i, 0)),         # m
                  pl.BlockSpec((tile_src, ha), lambda i, k: (k, 0)),        # h_d1
                  pl.BlockSpec((ha, fp), lambda i, k: (0, 0))],             # W1^T
        out_specs=pl.BlockSpec((tile_dst, fp), lambda i, k: (i, 0)),
        scratch_shapes=[pltpu.VMEM((tile_dst, ha), f32),
                        pltpu.VMEM((tile_dst, 1), f32)],
        compiler_params=_compiler_params(2, dec_block),
        cost_estimate=pl.CostEstimate(
            flops=2 * np_ * np_ * ha + 2 * np_ * ha * fp,
            transcendentals=np_ * np_,
            bytes_accessed=_nbytes((np_, np_), jnp.int8)
            + grid_rows * _nbytes((np_, ha), cdt) + _nbytes((np_, fp), f32)),
    )(adj, asrc_row, adst_col, m_col, hd1, w1t_p)

    # Strip padding (outputs were kept lane-dense inside the kernels).
    return latent_p[:n, :d_out], recon_p[:n, :f_in]


# --------------------------------------------------------------------------- #
# Pure-JAX edge-list reference (mirrors PyG scatter-softmax semantics)
# --------------------------------------------------------------------------- #
def ref_forward(features, edge_index, w1, att_src, att_dst, w2):
    src, dst = edge_index[0], edge_index[1]
    n = features.shape[0]
    h_e1 = features @ w1
    alpha_src = (h_e1 * att_src).sum(-1)
    alpha_dst = (h_e1 * att_dst).sum(-1)

    def attn_aggregate(h):
        e = alpha_src[src] + alpha_dst[dst]
        e = jnp.where(e > 0, e, NEG_SLOPE * e)
        emax = jax.ops.segment_max(e, dst, num_segments=n)
        emax = jnp.where(jnp.isfinite(emax), emax, 0.0)
        p = jnp.exp(e - emax[dst])
        denom = jax.ops.segment_sum(p, dst, num_segments=n)
        a = p / jnp.maximum(denom[dst], 1e-30)
        return jax.ops.segment_sum(h[src] * a[:, None], dst, num_segments=n)

    h1 = jnp.maximum(attn_aggregate(h_e1), 0.0)
    latent = h1 @ w2
    h_d1 = latent @ w2.T
    h3 = jnp.maximum(attn_aggregate(h_d1), 0.0)
    recon = h3 @ w1.T
    return latent, recon


if __name__ == "__main__":
    # Small deterministic problem spanning several row tiles and source chunks:
    # N nodes, input_dim -> num_hidden -> out_dim (heads=1, concat=False).
    N, input_dim, num_hidden, out_dim = 300, 16, 32, 8

    key = jax.random.PRNGKey(0)
    k_x, k_w1, k_as, k_ad, k_w2 = jax.random.split(key, 5)

    features = jax.random.normal(k_x, (N, input_dim), jnp.float32)
    w1 = jax.random.normal(k_w1, (input_dim, num_hidden), jnp.float32) * (
        1.0 / jnp.sqrt(input_dim))
    att_src = jax.random.normal(k_as, (1, num_hidden), jnp.float32) * 0.1
    att_dst = jax.random.normal(k_ad, (1, num_hidden), jnp.float32) * 0.1
    w2 = jax.random.normal(k_w2, (num_hidden, out_dim), jnp.float32) * (
        1.0 / jnp.sqrt(num_hidden))

    # Deterministic graph: directed ring (+1) plus skip edges (+3), no duplicates.
    nodes = jnp.arange(N, dtype=jnp.int32)
    src = jnp.concatenate([nodes, nodes])
    dst = jnp.concatenate([(nodes + 1) % N, (nodes + 3) % N])
    edge_index = jnp.stack([src, dst]).astype(jnp.int32)   # [2, E]

    lat_ref, rec_ref = ref_forward(features, edge_index, w1, att_src, att_dst, w2)

    # Exact path: f32 softmax / aggregation operands, exact normalization.
    lat32, rec32 = gat_block_forward(features, edge_index, w1, att_src, att_dst,
                                     w2, tile_dst=128, tile_src=128,
                                     agg_dtype=jnp.float32)
    jax.block_until_ready((lat32, rec32))
    assert jnp.allclose(lat32, lat_ref, atol=2e-3, rtol=2e-3), float(
        jnp.max(jnp.abs(lat32 - lat_ref)))
    assert jnp.allclose(rec32, rec_ref, atol=2e-3, rtol=2e-3), float(
        jnp.max(jnp.abs(rec32 - rec_ref)))

    # Fast path: bf16 element-wise softmax + bf16 MXU aggregation operands
    # (f32 accumulation) -> compare at bf16-level tolerance.
    latent, recon = gat_block_forward(features, edge_index, w1, att_src, att_dst,
                                      w2, tile_dst=256, tile_src=256,
                                      agg_dtype=jnp.bfloat16)
    jax.block_until_ready((latent, recon))
    assert jnp.allclose(latent, lat_ref, atol=5e-2, rtol=5e-2), float(
        jnp.max(jnp.abs(latent - lat_ref)))
    assert jnp.allclose(recon, rec_ref, atol=5e-2, rtol=5e-2), float(
        jnp.max(jnp.abs(recon - rec_ref)))

    print("KERNEL_OK")
</pallas_src>

<mosaic_0001>
module attributes {stable_mosaic.version = 11 : i64} {
  func.func @_proj_kernel(%arg0: i32, %arg1: memref<128x128xf32, #tpu.memory_space<vmem>>, %arg2: memref<128x128xf32, #tpu.memory_space<vmem>>, %arg3: memref<128x128xf32, #tpu.memory_space<vmem>>) attributes {dimension_semantics = [#tpu.dimension_semantics<parallel>], iteration_bounds = array<i64: 3>, scalar_prefetch = 0 : i64, scratch_operands = 0 : i64, tpu.core_type = #tpu.core_type<tc>, window_params = [{transform_indices = @transform_0, window_bounds = array<i64: 128, 128>}, {pipeline_mode = #tpu.pipeline_mode<synchronous>, transform_indices = @transform_1, window_bounds = array<i64: 128, 128>}, {transform_indices = @transform_2, window_bounds = array<i64: 128, 128>}]} {
    %c0 = arith.constant 0 : index
    %c0_0 = arith.constant 0 : index
    %0 = vector.load %arg1[%c0, %c0_0] : memref<128x128xf32, #tpu.memory_space<vmem>>, vector<128x128xf32>
    %c0_1 = arith.constant 0 : index
    %c0_2 = arith.constant 0 : index
    %1 = vector.load %arg2[%c0_1, %c0_2] : memref<128x128xf32, #tpu.memory_space<vmem>>, vector<128x128xf32>
    %cst = arith.constant dense<0.000000e+00> : vector<128x128xf32>
    %2 = tpu.matmul %0, %1, %cst {dimension_numbers = #tpu.dot_dimension_numbers<[1], [0], [0], [1], [0, 0, 1, 1], [], []>} : vector<128x128xf32>, vector<128x128xf32>, vector<128x128xf32> -> vector<128x128xf32>
    %c0_3 = arith.constant 0 : index
    %c0_4 = arith.constant 0 : index
    %3 = vector.load %arg3[%c0_3, %c0_4] : memref<128x128xf32, #tpu.memory_space<vmem>>, vector<128x128xf32>
    tpu.vector_store %arg3[%c0_3, %c0_4], %2 {strides = array<i32>} : memref<128x128xf32, #tpu.memory_space<vmem>>, vector<128x128xf32>,
    return
  }
  func.func @transform_0(%arg0: i32) -> (i32, i32) {
    %c0_i32 = arith.constant 0 : i32
    %c0_i32_0 = arith.constant 0 : i32
    return %arg0, %c0_i32 : i32, i32
  }
  func.func @transform_1(%arg0: i32) -> (i32, i32) {
    %c0_i32 = arith.constant 0 : i32
    %c0_i32_0 = arith.constant 0 : i32
    %c0_i32_1 = arith.constant 0 : i32
    return %c0_i32, %c0_i32_0 : i32, i32
  }
  func.func @transform_2(%arg0: i32) -> (i32, i32) {
    %c0_i32 = arith.constant 0 : i32
    %c0_i32_0 = arith.constant 0 : i32
    return %arg0, %c0_i32 : i32, i32
  }
}

</mosaic_0001>

<llo_original>
// kernel: tpu_custom_call.1
$region0: #{tpu_custom_call.1}
  #allocation0 [shape = 'u32[]', space=smem, size = 0x4, offset = 0x4, fixed_abs, tag = 'smem constant byte address 0x4 - core index']
  #allocation1 [shape = 'u32[72,128]{1,0:T(1,128)}', space=vmem, size = 0x9000, scoped, tag = 'internal scratch']
  %s0 = inlined_call_operand.hbm [shape: f32[384,128], index: 0, kind: input, shape index: {}]
  %s1 = inlined_call_operand.hbm [shape: f32[128,128], index: 1, kind: input, shape index: {}]
  %s2 = inlined_call_operand.hbm [shape: f32[384,128], index: 2, kind: output, shape index: {}]
  %s3 = sld [smem:[#allocation0]]
  $region49: #{tpu_custom_call.1} parent=0
    _
  %s5 = ssub.s32 1, %s3
  %s6 = scalar_select 0, %s5, %s3
  $region1: #{tpu_custom_call.1} parent=0
    #allocation2 [shape = 'u8[131072]{0}', space=vmem, size = 0x20000, scoped, tag = 'input window, operand 0']
    #allocation3 [shape = 's32[2]{0}', space=sflag, size = 0x8, scoped, tag = 'scoped memory for tpu_custom_call.1']
    #allocation4 [shape = 's32[2]{0}', space=sflag, size = 0x8, scoped, tag = 'scoped memory for tpu_custom_call.1']
    #allocation5 [shape = 'u8[65536]{0}', space=vmem, size = 0x10000, scoped, tag = 'input window, operand 1, single buffered']
    #allocation6 [shape = 's32[1]{0}', space=sflag, size = 0x4, scoped, tag = 'scoped memory for tpu_custom_call.1']
    #allocation7 [shape = 'u8[131072]{0}', space=vmem, size = 0x20000, scoped, tag = 'output window, operand 0']
    %7 = vsyncpa [#allocation3], 0
    %s8 = scalar_lea.sflag [#allocation3], 1
    %9 = vsyncpa %s8, 0
    %10 = vsyncpa [#allocation6], 0
    %11 = vsyncpa [#allocation4], 0
    %s12 = scalar_lea.sflag [#allocation4], 1
    %13 = vsyncpa %s12, 0
    loop: start=0, step=1, limit=5
    $region2: #{tpu_custom_call.1} parent=1 // loop_pre_header
      _
    $region3: #{tpu_custom_call.1} parent=1 // loop_header
      %s15 = sphi 0, %s19
      %p16 = scmp.ge.s32.totalorder %s15, 5
      %s25 = sphi 0, %s27
      %s28 = sphi 0, %s25
      %s29 = sphi 0, %s28
      %s45 = sphi 0, %s29
      %s49 = sphi 0, %s49
      %s51 = sphi 0, %s49
      %s52 = sphi 0, %s51
      %s66 = sphi 0, %s52
      %s72 = sphi 0, %s74
      %s75 = sphi 0, %s72
      %s76 = sphi 0, %s75
      %s92 = sphi 0, %s76
    $region4: #{tpu_custom_call.1} parent=1 // loop_header_branch
      %18 = sbr.rel (%p16) target = $region8
    $region5: #{tpu_custom_call.1} parent=1 // loop_body
      %s20 = ssub.s32 %s15, 1
      %s21 = ssub.s32 %s15, 2
      %s22 = sadd.s32 %s15, 1
      %s23 = ssub.s32 %s15, %s22
      %p24 = scmp.eq.s32.totalorder %s23, 0
      %s26 = sadd.s32 %s25, 1
      %s27 = scalar_select %p24, %s25, %s26
      %p30 = pneg %p24
      %p31 = scmp.eq.s32.totalorder %s15, 2
      %p32 = por %p30, %p31
      %p33 = scmp.ne.s32.totalorder %s25, %s28
      %p34 = scmp.eq.s32.totalorder %s15, 0
      %p35 = por %p33, %p34
      %p36 = scmp.ne.s32.totalorder %s25, %s28
      %p37 = scmp.eq.s32.totalorder %s20, 2
      %p38 = por %p36, %p37
      %p39 = scmp.ne.s32.totalorder %s28, %s29
      %p40 = scmp.eq.s32.totalorder %s20, 0
      %p41 = por %p39, %p40
      %p42 = scmp.ne.s32.totalorder %s28, %s29
      %p43 = scmp.eq.s32.totalorder %s21, 2
      %p44 = por %p42, %p43
      %p46 = scmp.ne.s32.totalorder %s29, %s45
      %p47 = scmp.eq.s32.totalorder %s21, 0
      %p48 = por %p46, %p47
      %s50 = sadd.s32 %s49, 1
      %p53 = scmp.eq.s32.totalorder %s15, 2
      %p54 = scmp.ne.s32.totalorder %s49, %s51
      %p55 = scmp.eq.s32.totalorder %s15, 0
      %p56 = por %p54, %p55
      %p57 = scmp.ne.s32.totalorder %s49, %s51
      %p58 = scmp.eq.s32.totalorder %s20, 2
      %p59 = por %p57, %p58
      %p60 = scmp.ne.s32.totalorder %s51, %s52
      %p61 = scmp.eq.s32.totalorder %s20, 0
      %p62 = por %p60, %p61
      %p63 = scmp.ne.s32.totalorder %s51, %s52
      %p64 = scmp.eq.s32.totalorder %s21, 2
      %p65 = por %p63, %p64
      %p67 = scmp.ne.s32.totalorder %s52, %s66
      %p68 = scmp.eq.s32.totalorder %s21, 0
      %p69 = por %p67, %p68
      %s70 = ssub.s32 %s15, %s22
      %p71 = scmp.eq.s32.totalorder %s70, 0
      %s73 = sadd.s32 %s72, 1
      %s74 = scalar_select %p71, %s72, %s73
      %p77 = pneg %p71
      %p78 = scmp.eq.s32.totalorder %s15, 2
      %p79 = por %p77, %p78
      %p80 = scmp.ne.s32.totalorder %s72, %s75
      %p81 = scmp.eq.s32.totalorder %s15, 0
      %p82 = por %p80, %p81
      %p83 = scmp.ne.s32.totalorder %s72, %s75
      %p84 = scmp.eq.s32.totalorder %s20, 2
      %p85 = por %p83, %p84
      %p86 = scmp.ne.s32.totalorder %s75, %s76
      %p87 = scmp.eq.s32.totalorder %s20, 0
      %p88 = por %p86, %p87
      %p89 = scmp.ne.s32.totalorder %s75, %s76
      %p90 = scmp.eq.s32.totalorder %s21, 2
      %p91 = por %p89, %p90
      %p93 = scmp.ne.s32.totalorder %s76, %s92
      %p94 = scmp.eq.s32.totalorder %s21, 0
      %p95 = por %p93, %p94
      %p96 = scmp.le.s32.totalorder 1, %s15
      %p97 = scmp.lt.s32.totalorder %s15, 4
      %p98 = pnand %p96, %p97
      %p99 = pneg %p98
      // Predicated region
      $region9: #{tpu_custom_call.1} parent=5 // pred_check
        _
      $region10: #{tpu_custom_call.1} parent=5 // pred_check_branch
        %101 = sbr.rel (%p98) target = $region12
      $region11: #{tpu_custom_call.1} parent=5 // pred_region
        %s102 = ssub.s32 %s15, 1
        // Predicated region
        $region13: #{tpu_custom_call.1} parent=11 // pred_check
          %p103 = pneg %p62
        $region14: #{tpu_custom_call.1} parent=11 // pred_check_branch
          %105 = sbr.rel (%p103) target = $region16
        $region15: #{tpu_custom_call.1} parent=11 // pred_region
          %107 = vsyncadd [#allocation6], 0
          %s108 = sshll.u32 %s1, 4
          %s109 = int_to_ptr.hbm [resolvable:$true] %s108
          %s110 = sshll.u32 [#allocation5], 4
          %s111 = int_to_ptr.vmem [resolvable:$true] %s110
          %116 = dma.hbm_to_vmem [thread:$0]  %s109, 2048, %s111, [#allocation6], 128, 128, 8
        $region16: #{tpu_custom_call.1} parent=11 // pred_fallthru
          _
      $region12: #{tpu_custom_call.1} parent=5 // pred_fallthru
        _
      %p117 = scmp.lt.s32.totalorder %s15, 3
      // Predicated region
      $region17: #{tpu_custom_call.1} parent=5 // pred_check
        %p118 = pneg %p117
      $region18: #{tpu_custom_call.1} parent=5 // pred_check_branch
        %120 = sbr.rel (%p118) target = $region20
      $region19: #{tpu_custom_call.1} parent=5 // pred_region
        // Predicated region
        $region21: #{tpu_custom_call.1} parent=19 // pred_check
          %p121 = pneg %p35
        $region22: #{tpu_custom_call.1} parent=19 // pred_check_branch
          %123 = sbr.rel (%p121) target = $region24
        $region23: #{tpu_custom_call.1} parent=19 // pred_region
          %s124 = sand.u32 %s25, 1
          %s125 = scalar_lea.sflag [#allocation3], %s124
          %s126 = sand.u32 %s25, 1
          %s127 = smul.addr %s126, 128
          %s128 = scalar_lea.vmem [#allocation2], %s127
          %s129 = smul.u32 16, %s15
          %131 = vsyncadd %s125, 0
          %s132 = smul.addr %s129, 8
          %s133 = scalar_lea.hbm %s0, %s132
          %s134 = sshll.u32 %s133, 4
          %s135 = int_to_ptr.hbm [resolvable:$true] %s134
          %s136 = sshll.u32 %s128, 4
          %s137 = int_to_ptr.vmem [resolvable:$true] %s136
          %142 = dma.hbm_to_vmem [thread:$0]  %s135, 2048, %s137, %s125, 128, 128, 8
        $region24: #{tpu_custom_call.1} parent=19 // pred_fallthru
          _
      $region20: #{tpu_custom_call.1} parent=5 // pred_fallthru
        _
      %p143 = scmp.le.s32.totalorder 1, %s15
      %p144 = scmp.lt.s32.totalorder %s15, 4
      %p145 = pnand %p143, %p144
      %p146 = pneg %p145
      // Predicated region
      $region25: #{tpu_custom_call.1} parent=5 // pred_check
        _
      $region26: #{tpu_custom_call.1} parent=5 // pred_check_branch
        %148 = sbr.rel (%p145) target = $region28
      $region27: #{tpu_custom_call.1} parent=5 // pred_region
        %s149 = ssub.s32 %s15, 1
        %s150 = sand.u32 %s28, 1
        %s151 = scalar_lea.sflag [#allocation3], %s150
        %s152 = sand.u32 %s28, 1
        %s153 = smul.addr %s152, 128
        %s154 = scalar_lea.vmem [#allocation2], %s153
        // Predicated region
        $region29: #{tpu_custom_call.1} parent=27 // pred_check
          %p155 = pneg %p41
        $region30: #{tpu_custom_call.1} parent=27 // pred_check_branch
          %157 = sbr.rel (%p155) target = $region32
        $region31: #{tpu_custom_call.1} parent=27 // pred_region
          %159 = dma.done %s151, 2048
        $region32: #{tpu_custom_call.1} parent=27 // pred_fallthru
          _
        // Predicated region
        $region33: #{tpu_custom_call.1} parent=27 // pred_check
          %p160 = pneg %p62
        $region34: #{tpu_custom_call.1} parent=27 // pred_check_branch
          %162 = sbr.rel (%p160) target = $region36
        $region35: #{tpu_custom_call.1} parent=27 // pred_region
          %164 = dma.done [#allocation6], 2048
        $region36: #{tpu_custom_call.1} parent=27 // pred_fallthru
          _
        %s165 = sand.u32 %s28, 1
        %s166 = scalar_lea.sflag [#allocation3], %s165
        %s167 = sand.u32 %s28, 1
        %s168 = smul.addr %s167, 128
        %s169 = scalar_lea.vmem [#allocation2], %s168
        %p170 = pneg %p41
        %p171 = pneg %p38
        %p172 = pneg %p62
        %p173 = pneg %p59
        %p174 = pneg %p88
        %p175 = pneg %p85
        %s176 = sand.u32 %s75, 1
        %s177 = scalar_lea.sflag [#allocation4], %s176
        %s178 = sand.u32 %s75, 1
        %s179 = smul.addr %s178, 128
        %s180 = scalar_lea.vmem [#allocation7], %s179
        %s181 = smul.u32 16, %s20
        %s182 = smul.u32 16, %s20
        %v183 = vld [vmem:[%s154] sm:$0xff]
        %v184 = vld [vmem:[%s154 + $0x8] sm:$0xff]
        %v185 = vld [vmem:[%s154 + $0x10] sm:$0xff]
        %v186 = vld [vmem:[%s154 + $0x18] sm:$0xff]
        %v187 = vld [vmem:[%s154 + $0x20] sm:$0xff]
        %v188 = vld [vmem:[%s154 + $0x28] sm:$0xff]
        %v189 = vld [vmem:[%s154 + $0x30] sm:$0xff]
        %v190 = vld [vmem:[%s154 + $0x38] sm:$0xff]
        %v191 = vld [vmem:[%s154 + $0x40] sm:$0xff]
        %v192 = vld [vmem:[%s154 + $0x48] sm:$0xff]
        %v193 = vld [vmem:[%s154 + $0x50] sm:$0xff]
        %v194 = vld [vmem:[%s154 + $0x58] sm:$0xff]
        %v195 = vld [vmem:[%s154 + $0x60] sm:$0xff]
        %v196 = vld [vmem:[%s154 + $0x68] sm:$0xff]
        %v197 = vld [vmem:[%s154 + $0x70] sm:$0xff]
        %v198 = vld [vmem:[%s154 + $0x78] sm:$0xff]
        %v199 = vld [vmem:[#allocation5] sm:$0xff]
        %v200 = vld [vmem:[#allocation5 + $0x8] sm:$0xff]
        %v201 = vld [vmem:[#allocation5 + $0x10] sm:$0xff]
        %v202 = vld [vmem:[#allocation5 + $0x18] sm:$0xff]
        %v203 = vld [vmem:[#allocation5 + $0x20] sm:$0xff]
        %v204 = vld [vmem:[#allocation5 + $0x28] sm:$0xff]
        %v205 = vld [vmem:[#allocation5 + $0x30] sm:$0xff]
        %v206 = vld [vmem:[#allocation5 + $0x38] sm:$0xff]
        %v207 = vld [vmem:[#allocation5 + $0x40] sm:$0xff]
        %v208 = vld [vmem:[#allocation5 + $0x48] sm:$0xff]
        %v209 = vld [vmem:[#allocation5 + $0x50] sm:$0xff]
        %v210 = vld [vmem:[#allocation5 + $0x58] sm:$0xff]
        %v211 = vld [vmem:[#allocation5 + $0x60] sm:$0xff]
        %v212 = vld [vmem:[#allocation5 + $0x68] sm:$0xff]
        %v213 = vld [vmem:[#allocation5 + $0x70] sm:$0xff]
        %v214 = vld [vmem:[#allocation5 + $0x78] sm:$0xff]
        %215 = vmatpush.msra.mxu0 %v214
        %216 = vmatpush.msra.mxu0 %v213
        %217 = vmatpush.msra.mxu0 %v212
        %218 = vmatpush.msra.mxu0 %v211
        %219 = vmatpush.msra.mxu0 %v210
        %220 = vmatpush.msra.mxu0 %v209
        %221 = vmatpush.msra.mxu0 %v208
        %222 = vmatpush.msra.mxu0 %v207
        %223 = vmatpush.msra.mxu0 %v206
        %224 = vmatpush.msra.mxu0 %v205
        %225 = vmatpush.msra.mxu0 %v204
        %226 = vmatpush.msra.mxu0 %v203
        %227 = vmatpush.msra.mxu0 %v202
        %228 = vmatpush.msra.mxu0 %v201
        %229 = vmatpush.msra.mxu0 %v200
        %230 = vmatpush.msra.mxu0 %v199
        %231 = vmatmul.f32.gmra.mxu0 %v183
        %v232 = vpop.f32.mrf.mxu0
        %v233 = vadd.f32 0.0, %v232
        %234 = vmatmul.f32.gmra.mxu0 %v184
        %v235 = vpop.f32.mrf.mxu0
        %v236 = vadd.f32 0.0, %v235
        %237 = vmatmul.f32.gmra.mxu0 %v185
        %v238 = vpop.f32.mrf.mxu0
        %v239 = vadd.f32 0.0, %v238
        %240 = vmatmul.f32.gmra.mxu0 %v186
        %v241 = vpop.f32.mrf.mxu0
        %v242 = vadd.f32 0.0, %v241
        %243 = vmatmul.f32.gmra.mxu0 %v187
        %v244 = vpop.f32.mrf.mxu0
        %v245 = vadd.f32 0.0, %v244
        %246 = vmatmul.f32.gmra.mxu0 %v188
        %v247 = vpop.f32.mrf.mxu0
        %v248 = vadd.f32 0.0, %v247
        %249 = vmatmul.f32.gmra.mxu0 %v189
        %v250 = vpop.f32.mrf.mxu0
        %v251 = vadd.f32 0.0, %v250
        %252 = vmatmul.f32.gmra.mxu0 %v190
        %v253 = vpop.f32.mrf.mxu0
        %v254 = vadd.f32 0.0, %v253
        %255 = vmatmul.f32.gmra.mxu0 %v191
        %v256 = vpop.f32.mrf.mxu0
        %v257 = vadd.f32 0.0, %v256
        %258 = vmatmul.f32.gmra.mxu0 %v192
        %v259 = vpop.f32.mrf.mxu0
        %v260 = vadd.f32 0.0, %v259
        %261 = vmatmul.f32.gmra.mxu0 %v193
        %v262 = vpop.f32.mrf.mxu0
        %v263 = vadd.f32 0.0, %v262
        %264 = vmatmul.f32.gmra.mxu0 %v194
        %v265 = vpop.f32.mrf.mxu0
        %v266 = vadd.f32 0.0, %v265
        %267 = vmatmul.f32.gmra.mxu0 %v195
        %v268 = vpop.f32.mrf.mxu0
        %v269 = vadd.f32 0.0, %v268
        %270 = vmatmul.f32.gmra.mxu0 %v196
        %v271 = vpop.f32.mrf.mxu0
        %v272 = vadd.f32 0.0, %v271
        %273 = vmatmul.f32.gmra.mxu0 %v197
        %v274 = vpop.f32.mrf.mxu0
        %v275 = vadd.f32 0.0, %v274
        %276 = vmatmul.f32.gmra.mxu0 %v198
        %v277 = vpop.f32.mrf.mxu0
        %v278 = vadd.f32 0.0, %v277
        %279 = vdwg.mxu0
        %280 = vst [vmem:[%s180] sm:$0xff] %v233
        %281 = vst [vmem:[%s180 + $0x8] sm:$0xff] %v236
        %282 = vst [vmem:[%s180 + $0x10] sm:$0xff] %v239
        %283 = vst [vmem:[%s180 + $0x18] sm:$0xff] %v242
        %284 = vst [vmem:[%s180 + $0x20] sm:$0xff] %v245
        %285 = vst [vmem:[%s180 + $0x28] sm:$0xff] %v248
        %286 = vst [vmem:[%s180 + $0x30] sm:$0xff] %v251
        %287 = vst [vmem:[%s180 + $0x38] sm:$0xff] %v254
        %288 = vst [vmem:[%s180 + $0x40] sm:$0xff] %v257
        %289 = vst [vmem:[%s180 + $0x48] sm:$0xff] %v260
        %290 = vst [vmem:[%s180 + $0x50] sm:$0xff] %v263
        %291 = vst [vmem:[%s180 + $0x58] sm:$0xff] %v266
        %292 = vst [vmem:[%s180 + $0x60] sm:$0xff] %v269
        %293 = vst [vmem:[%s180 + $0x68] sm:$0xff] %v272
        %294 = vst [vmem:[%s180 + $0x70] sm:$0xff] %v275
        %295 = vst [vmem:[%s180 + $0x78] sm:$0xff] %v278
        %s296 = sand.u32 %s75, 1
        %s297 = scalar_lea.sflag [#allocation4], %s296
        %s298 = sand.u32 %s75, 1
        %s299 = smul.addr %s298, 128
        %s300 = scalar_lea.vmem [#allocation7], %s299
        // Predicated region
        $region37: #{tpu_custom_call.1} parent=27 // pred_check
          %p301 = pneg %p85
        $region38: #{tpu_custom_call.1} parent=27 // pred_check_branch
          %303 = sbr.rel (%p301) target = $region40
        $region39: #{tpu_custom_call.1} parent=27 // pred_region
          %s304 = smul.u32 16, %s20
          %306 = vsyncadd %s297, 0
          %s307 = smul.addr %s304, 8
          %s308 = scalar_lea.hbm %s2, %s307
          %s309 = sshll.u32 %s300, 4
          %s310 = int_to_ptr.vmem [resolvable:$true] %s309
          %s311 = sshll.u32 %s308, 4
          %s312 = int_to_ptr.hbm [resolvable:$true] %s311
          %317 = dma.vmem_to_hbm [thread:$0]  %s310, 2048, %s312, %s297, 128, 128, 8
        $region40: #{tpu_custom_call.1} parent=27 // pred_fallthru
          _
      $region28: #{tpu_custom_call.1} parent=5 // pred_fallthru
        _
      %p318 = scmp.le.s32.totalorder 2, %s15
      // Predicated region
      $region41: #{tpu_custom_call.1} parent=5 // pred_check
        %p319 = pneg %p318
      $region42: #{tpu_custom_call.1} parent=5 // pred_check_branch
        %321 = sbr.rel (%p319) target = $region44
      $region43: #{tpu_custom_call.1} parent=5 // pred_region
        %s322 = ssub.s32 %s15, 2
        // Predicated region
        $region45: #{tpu_custom_call.1} parent=43 // pred_check
          %p323 = pneg %p91
        $region46: #{tpu_custom_call.1} parent=43 // pred_check_branch
          %325 = sbr.rel (%p323) target = $region48
        $region47: #{tpu_custom_call.1} parent=43 // pred_region
          %s326 = sand.u32 %s76, 1
          %s327 = scalar_lea.sflag [#allocation4], %s326
          %s328 = sand.u32 %s76, 1
          %s329 = smul.addr %s328, 128
          %s330 = scalar_lea.vmem [#allocation7], %s329
          %332 = dma.done %s327, 2048
        $region48: #{tpu_custom_call.1} parent=43 // pred_fallthru
          _
      $region44: #{tpu_custom_call.1} parent=5 // pred_fallthru
        _
    $region6: #{tpu_custom_call.1} parent=1 // loop_footer
      %s19 = sadd.s32 1, %s15
    $region7: #{tpu_custom_call.1} parent=1 // loop_footer_branch
      %14 = sbr.rel target = $region3
    $region8: #{tpu_custom_call.1} parent=1 // loop_exit
      _
    %333 = vsyncpa [#allocation3], 1
    %s334 = scalar_lea.sflag [#allocation3], 1
    %335 = vsyncpa %s334, 1
    %336 = vsyncpa [#allocation6], 1
    %337 = vsyncpa [#allocation4], 1
    %s338 = scalar_lea.sflag [#allocation4], 1
    %339 = vsyncpa %s338, 1

</llo_original>
